<compile_context>
chip_gen: v5e
topology: v5e:2x2
jax: 0.10.0
libtpu: 0.0.40
codegen_flags: <defaults>
</compile_context>

<pallas_src>
import jax
import jax.numpy as jnp
from jax.experimental import pallas as pl
from jax.experimental.pallas import tpu as pltpu

_LANE = 128
_SUBLANE_BF16 = 16                       # bf16 packs 16 rows per vreg
_FUSED_VMEM_BUDGET = 8 * 1024 * 1024     # operand budget for the single fused call


def _round_up(x, m):
    return ((x + m - 1) // m) * m


# ----------------------------------------------------------------------------
# Fused kernel: conv1 -> relu -> conv2 -> relu -> conv3 -> mean-pool -> linear
# ----------------------------------------------------------------------------
def _gcn_fused_kernel(adj_ref, x_ref, pool_ref,
                      w1_ref, b1_ref, w2_ref, b2_ref, w3_ref, b3_ref,
                      wl_ref, bl_ref, out_ref):
    adj = adj_ref[...]                                     # (Np, Np) bf16, resident

    # conv1: h1 = relu(Ahat @ (X @ W1) + b1)
    z1 = jnp.dot(x_ref[...], w1_ref[...], preferred_element_type=jnp.float32)
    h1 = jnp.maximum(
        jnp.dot(adj, z1.astype(adj.dtype), preferred_element_type=jnp.float32)
        + b1_ref[...], 0.0)

    # conv2: h2 = relu(Ahat @ (h1 @ W2) + b2)
    z2 = jnp.dot(h1.astype(w2_ref.dtype), w2_ref[...],
                 preferred_element_type=jnp.float32)
    h2 = jnp.maximum(
        jnp.dot(adj, z2.astype(adj.dtype), preferred_element_type=jnp.float32)
        + b2_ref[...], 0.0)

    # conv3 (no relu): h3 = Ahat @ (h2 @ W3) + b3
    z3 = jnp.dot(h2.astype(w3_ref.dtype), w3_ref[...],
                 preferred_element_type=jnp.float32)
    h3 = jnp.dot(adj, z3.astype(adj.dtype),
                 preferred_element_type=jnp.float32) + b3_ref[...]

    # global_mean_pool (dense averaging matrix P) -> dropout(eval)=identity -> Linear
    pooled = jnp.dot(pool_ref[...], h3, preferred_element_type=jnp.float32)
    out_ref[...] = (jnp.dot(pooled.astype(wl_ref.dtype), wl_ref[...],
                            preferred_element_type=jnp.float32)
                    + bl_ref[...]).astype(out_ref.dtype)


def _gcn_forward(adj, x, pool, w1, b1, w2, b2, w3, b3, wl, bl):
    args = (adj, x, pool, w1, b1, w2, b2, w3, b3, wl, bl)
    footprint = sum(int(a.size) * a.dtype.itemsize for a in args)
    assert footprint <= _FUSED_VMEM_BUDGET, (
        f"fused GCN operands ({footprint} B) exceed the single-call VMEM budget; "
        f"a tiled multi-call path is needed for graphs this large")
    Gp, Cp = pool.shape[0], wl.shape[1]
    vmem = pl.BlockSpec(memory_space=pltpu.MemorySpace.VMEM)
    return pl.pallas_call(
        _gcn_fused_kernel,
        out_shape=jax.ShapeDtypeStruct((Gp, Cp), jnp.float32),
        in_specs=[vmem] * len(args),
        out_specs=vmem,
    )(*args)


gcn_forward = jax.jit(_gcn_forward)


# ----------------------------------------------------------------------------
# Plain-JAX glue: dense normalized adjacency, mean-pool matrix, params, padding
# ----------------------------------------------------------------------------
def build_norm_adj(edge_index, num_nodes):
    """Ahat = D^-1/2 (A + I) D^-1/2, matching PyG gcn_norm with self-loops."""
    src, dst = edge_index[0], edge_index[1]
    a = jnp.zeros((num_nodes, num_nodes), jnp.float32).at[dst, src].add(1.0)
    eye = jnp.eye(num_nodes, dtype=jnp.float32)
    # add_remaining_self_loops semantics: diagonal weight is exactly 1.
    a = a * (1.0 - eye) + eye
    deg = jnp.sum(a, axis=1)
    dinv = jnp.where(deg > 0, 1.0 / jnp.sqrt(deg), 0.0)
    return dinv[:, None] * a * dinv[None, :]


def build_mean_pool(batch, num_graphs, num_nodes):
    onehot = (batch[None, :] == jnp.arange(num_graphs)[:, None]).astype(jnp.float32)
    counts = jnp.maximum(jnp.sum(onehot, axis=1, keepdims=True), 1.0)
    return onehot / counts  # (G, N): rows average their graph's nodes


def glorot(key, shape):
    fan_in, fan_out = shape
    lim = jnp.sqrt(6.0 / (fan_in + fan_out))
    return jax.random.uniform(key, shape, jnp.float32, -lim, lim)


def _pad2(a, rows, cols):
    return jnp.zeros((rows, cols), a.dtype).at[:a.shape[0], :a.shape[1]].set(a)


def gcn_reference(adj, x, w1, b1, w2, b2, w3, b3, pool, wl, bl):
    h = jnp.maximum(adj @ (x @ w1) + b1, 0.0)
    h = jnp.maximum(adj @ (h @ w2) + b2, 0.0)
    h = adj @ (h @ w3) + b3
    return (pool @ h) @ wl + bl


if __name__ == "__main__":
    # num_node_features=16, hidden_channels=32, num_classes=8,
    # N=32 nodes across G=4 graphs, E=64 edges.
    N, F, H, C, G, E = 32, 16, 32, 8, 4, 64

    key = jax.random.PRNGKey(0)
    k_x, k_e, k1, k2, k3, kl, kb = jax.random.split(key, 7)

    x = jax.random.normal(k_x, (N, F), jnp.float32)
    edge_index = jax.random.randint(k_e, (2, E), 0, N, jnp.int32)
    batch = jnp.repeat(jnp.arange(G, dtype=jnp.int32), N // G)

    w1, b1 = glorot(k1, (F, H)), jnp.zeros((1, H), jnp.float32)
    w2, b2 = glorot(k2, (H, H)), jnp.zeros((1, H), jnp.float32)
    w3, b3 = glorot(k3, (H, H)), jnp.zeros((1, H), jnp.float32)
    wl = glorot(kl, (H, C))
    bl = 0.01 * jax.random.normal(kb, (1, C), jnp.float32)

    adj = build_norm_adj(edge_index, N)   # (N, N) dense normalized adjacency
    pool = build_mean_pool(batch, G, N)   # (G, N) mean-pool matrix

    # Padding: lane dims (F/H/C) to 128 for lane-dense MXU operands and output;
    # node dim only to the bf16 sublane pack (16); graph dim to the f32 sublane (8).
    Fp = _round_up(F, _LANE)
    Hp = _round_up(H, _LANE)
    Cp = _round_up(C, _LANE)
    Np = _round_up(N, _SUBLANE_BF16)
    Gp = max(8, _round_up(G, 8))

    bf16 = jnp.bfloat16
    adj_p = _pad2(adj, Np, Np).astype(bf16)
    x_p = _pad2(x, Np, Fp).astype(bf16)
    pool_p = _pad2(pool, Gp, Np)                 # f32 for exact averaging weights
    w1_p = _pad2(w1, Fp, Hp).astype(bf16)
    w2_p = _pad2(w2, Hp, Hp).astype(bf16)
    w3_p = _pad2(w3, Hp, Hp).astype(bf16)
    wl_p = _pad2(wl, Hp, Cp).astype(bf16)
    b1_p = _pad2(b1, 1, Hp)
    b2_p = _pad2(b2, 1, Hp)
    b3_p = _pad2(b3, 1, Hp)
    bl_p = _pad2(bl, 1, Cp)

    out_pad = gcn_forward(adj_p, x_p, pool_p, w1_p, b1_p, w2_p, b2_p,
                          w3_p, b3_p, wl_p, bl_p)
    out = out_pad[:G, :C]
    jax.block_until_ready(out)

    assert out.shape == (G, C) and out.dtype == jnp.float32

    # Sanity check vs a pure-f32 JAX reference (loose tolerance for bf16 operands).
    ref = gcn_reference(adj, x, w1, b1, w2, b2, w3, b3, pool, wl, bl)
    err = float(jnp.max(jnp.abs(out - ref)))
    scale = float(jnp.max(jnp.abs(ref)))
    assert err <= 0.08 * scale + 0.02, f"kernel/reference mismatch: {err} vs scale {scale}"

    print("KERNEL_OK")
</pallas_src>

<mosaic_0001>
module attributes {stable_mosaic.version = 11 : i64} {
  func.func @_gcn_fused_kernel(%arg0: memref<32x32xbf16, #tpu.memory_space<vmem>>, %arg1: memref<32x128xbf16, #tpu.memory_space<vmem>>, %arg2: memref<8x32xf32, #tpu.memory_space<vmem>>, %arg3: memref<128x128xbf16, #tpu.memory_space<vmem>>, %arg4: memref<1x128xf32, #tpu.memory_space<vmem>>, %arg5: memref<128x128xbf16, #tpu.memory_space<vmem>>, %arg6: memref<1x128xf32, #tpu.memory_space<vmem>>, %arg7: memref<128x128xbf16, #tpu.memory_space<vmem>>, %arg8: memref<1x128xf32, #tpu.memory_space<vmem>>, %arg9: memref<128x128xbf16, #tpu.memory_space<vmem>>, %arg10: memref<1x128xf32, #tpu.memory_space<vmem>>, %arg11: memref<8x128xf32, #tpu.memory_space<vmem>>) attributes {dimension_semantics = [], scalar_prefetch = 0 : i64, scratch_operands = 0 : i64, tpu.core_type = #tpu.core_type<tc>} {
    %c0 = arith.constant 0 : index
    %c0_0 = arith.constant 0 : index
    %0 = vector.load %arg0[%c0, %c0_0] : memref<32x32xbf16, #tpu.memory_space<vmem>>, vector<32x32xbf16>
    %c0_1 = arith.constant 0 : index
    %c0_2 = arith.constant 0 : index
    %1 = vector.load %arg1[%c0_1, %c0_2] : memref<32x128xbf16, #tpu.memory_space<vmem>>, vector<32x128xbf16>
    %c0_3 = arith.constant 0 : index
    %c0_4 = arith.constant 0 : index
    %2 = vector.load %arg3[%c0_3, %c0_4] : memref<128x128xbf16, #tpu.memory_space<vmem>>, vector<128x128xbf16>
    %cst = arith.constant dense<0.000000e+00> : vector<32x128xf32>
    %3 = tpu.matmul %1, %2, %cst {dimension_numbers = #tpu.dot_dimension_numbers<[1], [0], [0], [1], [0, 0, 1, 1], [], []>} : vector<32x128xbf16>, vector<128x128xbf16>, vector<32x128xf32> -> vector<32x128xf32>
    %4 = arith.truncf %3 : vector<32x128xf32> to vector<32x128xbf16>
    %cst_5 = arith.constant dense<0.000000e+00> : vector<32x128xf32>
    %5 = tpu.matmul %0, %4, %cst_5 {dimension_numbers = #tpu.dot_dimension_numbers<[1], [0], [0], [1], [0, 0, 1, 1], [], []>} : vector<32x32xbf16>, vector<32x128xbf16>, vector<32x128xf32> -> vector<32x128xf32>
    %c0_6 = arith.constant 0 : index
    %c0_7 = arith.constant 0 : index
    %6 = vector.load %arg4[%c0_6, %c0_7] : memref<1x128xf32, #tpu.memory_space<vmem>>, vector<1x128xf32>
    %7 = vector.broadcast %6 : vector<1x128xf32> to vector<32x128xf32>
    %8 = arith.addf %5, %7 : vector<32x128xf32>
    %cst_8 = arith.constant 0.000000e+00 : f32
    %9 = vector.broadcast %cst_8 : f32 to vector<32x128xf32>
    %10 = arith.maximumf %8, %9 : vector<32x128xf32>
    %11 = arith.truncf %10 : vector<32x128xf32> to vector<32x128xbf16>
    %c0_9 = arith.constant 0 : index
    %c0_10 = arith.constant 0 : index
    %12 = vector.load %arg5[%c0_9, %c0_10] : memref<128x128xbf16, #tpu.memory_space<vmem>>, vector<128x128xbf16>
    %cst_11 = arith.constant dense<0.000000e+00> : vector<32x128xf32>
    %13 = tpu.matmul %11, %12, %cst_11 {dimension_numbers = #tpu.dot_dimension_numbers<[1], [0], [0], [1], [0, 0, 1, 1], [], []>} : vector<32x128xbf16>, vector<128x128xbf16>, vector<32x128xf32> -> vector<32x128xf32>
    %14 = arith.truncf %13 : vector<32x128xf32> to vector<32x128xbf16>
    %cst_12 = arith.constant dense<0.000000e+00> : vector<32x128xf32>
    %15 = tpu.matmul %0, %14, %cst_12 {dimension_numbers = #tpu.dot_dimension_numbers<[1], [0], [0], [1], [0, 0, 1, 1], [], []>} : vector<32x32xbf16>, vector<32x128xbf16>, vector<32x128xf32> -> vector<32x128xf32>
    %c0_13 = arith.constant 0 : index
    %c0_14 = arith.constant 0 : index
    %16 = vector.load %arg6[%c0_13, %c0_14] : memref<1x128xf32, #tpu.memory_space<vmem>>, vector<1x128xf32>
    %17 = vector.broadcast %16 : vector<1x128xf32> to vector<32x128xf32>
    %18 = arith.addf %15, %17 : vector<32x128xf32>
    %cst_15 = arith.constant 0.000000e+00 : f32
    %19 = vector.broadcast %cst_15 : f32 to vector<32x128xf32>
    %20 = arith.maximumf %18, %19 : vector<32x128xf32>
    %21 = arith.truncf %20 : vector<32x128xf32> to vector<32x128xbf16>
    %c0_16 = arith.constant 0 : index
    %c0_17 = arith.constant 0 : index
    %22 = vector.load %arg7[%c0_16, %c0_17] : memref<128x128xbf16, #tpu.memory_space<vmem>>, vector<128x128xbf16>
    %cst_18 = arith.constant dense<0.000000e+00> : vector<32x128xf32>
    %23 = tpu.matmul %21, %22, %cst_18 {dimension_numbers = #tpu.dot_dimension_numbers<[1], [0], [0], [1], [0, 0, 1, 1], [], []>} : vector<32x128xbf16>, vector<128x128xbf16>, vector<32x128xf32> -> vector<32x128xf32>
    %24 = arith.truncf %23 : vector<32x128xf32> to vector<32x128xbf16>
    %cst_19 = arith.constant dense<0.000000e+00> : vector<32x128xf32>
    %25 = tpu.matmul %0, %24, %cst_19 {dimension_numbers = #tpu.dot_dimension_numbers<[1], [0], [0], [1], [0, 0, 1, 1], [], []>} : vector<32x32xbf16>, vector<32x128xbf16>, vector<32x128xf32> -> vector<32x128xf32>
    %c0_20 = arith.constant 0 : index
    %c0_21 = arith.constant 0 : index
    %26 = vector.load %arg8[%c0_20, %c0_21] : memref<1x128xf32, #tpu.memory_space<vmem>>, vector<1x128xf32>
    %27 = vector.broadcast %26 : vector<1x128xf32> to vector<32x128xf32>
    %28 = arith.addf %25, %27 : vector<32x128xf32>
    %c0_22 = arith.constant 0 : index
    %c0_23 = arith.constant 0 : index
    %29 = vector.load %arg2[%c0_22, %c0_23] : memref<8x32xf32, #tpu.memory_space<vmem>>, vector<8x32xf32>
    %cst_24 = arith.constant dense<0.000000e+00> : vector<8x128xf32>
    %30 = tpu.matmul %29, %28, %cst_24 {dimension_numbers = #tpu.dot_dimension_numbers<[1], [0], [0], [1], [0, 0, 1, 1], [], []>} : vector<8x32xf32>, vector<32x128xf32>, vector<8x128xf32> -> vector<8x128xf32>
    %31 = arith.truncf %30 : vector<8x128xf32> to vector<8x128xbf16>
    %c0_25 = arith.constant 0 : index
    %c0_26 = arith.constant 0 : index
    %32 = vector.load %arg9[%c0_25, %c0_26] : memref<128x128xbf16, #tpu.memory_space<vmem>>, vector<128x128xbf16>
    %cst_27 = arith.constant dense<0.000000e+00> : vector<8x128xf32>
    %33 = tpu.matmul %31, %32, %cst_27 {dimension_numbers = #tpu.dot_dimension_numbers<[1], [0], [0], [1], [0, 0, 1, 1], [], []>} : vector<8x128xbf16>, vector<128x128xbf16>, vector<8x128xf32> -> vector<8x128xf32>
    %c0_28 = arith.constant 0 : index
    %c0_29 = arith.constant 0 : index
    %34 = vector.load %arg10[%c0_28, %c0_29] : memref<1x128xf32, #tpu.memory_space<vmem>>, vector<1x128xf32>
    %35 = vector.broadcast %34 : vector<1x128xf32> to vector<8x128xf32>
    %36 = arith.addf %33, %35 : vector<8x128xf32>
    %c0_30 = arith.constant 0 : index
    %c0_31 = arith.constant 0 : index
    %37 = vector.load %arg11[%c0_30, %c0_31] : memref<8x128xf32, #tpu.memory_space<vmem>>, vector<8x128xf32>
    tpu.vector_store %arg11[%c0_30, %c0_31], %36 {strides = array<i32>} : memref<8x128xf32, #tpu.memory_space<vmem>>, vector<8x128xf32>,
    return
  }
}

</mosaic_0001>

<llo_original>
// kernel: _gcn_forward.1
$region0: #{_gcn_forward.1}
  #allocation0 [shape = 'u32[]', space=smem, size = 0x4, offset = 0x4, fixed_abs, tag = 'smem constant byte address 0x4 - core index']
  #allocation1 [shape = 'u32[72,128]{1,0:T(1,128)}', space=vmem, size = 0x9000, scoped, tag = 'internal scratch']
  %s0 = inlined_call_operand.hbm [shape: bf16[32,32], index: 0, kind: input, shape index: {}]
  %s1 = inlined_call_operand.hbm [shape: bf16[32,128], index: 1, kind: input, shape index: {}]
  %s2 = inlined_call_operand.hbm [shape: f32[8,32], index: 2, kind: input, shape index: {}]
  %s3 = inlined_call_operand.hbm [shape: bf16[128,128], index: 3, kind: input, shape index: {}]
  %s4 = inlined_call_operand.vmem [shape: f32[1,128], index: 4, kind: input, shape index: {}]
  %s5 = inlined_call_operand.hbm [shape: bf16[128,128], index: 5, kind: input, shape index: {}]
  %s6 = inlined_call_operand.vmem [shape: f32[1,128], index: 6, kind: input, shape index: {}]
  %s7 = inlined_call_operand.hbm [shape: bf16[128,128], index: 7, kind: input, shape index: {}]
  %s8 = inlined_call_operand.vmem [shape: f32[1,128], index: 8, kind: input, shape index: {}]
  %s9 = inlined_call_operand.hbm [shape: bf16[128,128], index: 9, kind: input, shape index: {}]
  %s10 = inlined_call_operand.vmem [shape: f32[1,128], index: 10, kind: input, shape index: {}]
  %s11 = inlined_call_operand.hbm [shape: f32[8,128], index: 11, kind: output, shape index: {}]
  %s12 = sld [smem:[#allocation0]]
  $region82: #{_gcn_forward.1} parent=0
    _
  %s14 = ssub.s32 1, %s12
  %s15 = scalar_select 0, %s14, %s12
  $region1: #{_gcn_forward.1} parent=0
    #allocation2 [shape = 'u8[8192]{0}', space=vmem, size = 0x2000, scoped, tag = 'input window, operand 0, single buffered']
    #allocation3 [shape = 's32[1]{0}', space=sflag, size = 0x4, scoped, tag = 'scoped memory for _gcn_forward.1']
    #allocation4 [shape = 's32[1]{0}', space=sflag, size = 0x4, scoped, tag = 'scoped memory for _gcn_forward.1']
    #allocation5 [shape = 'u8[8192]{0}', space=vmem, size = 0x2000, scoped, tag = 'input window, operand 1, single buffered']
    #allocation6 [shape = 's32[1]{0}', space=sflag, size = 0x4, scoped, tag = 'scoped memory for _gcn_forward.1']
    #allocation7 [shape = 'u8[4096]{0}', space=vmem, size = 0x1000, scoped, tag = 'input window, operand 2, single buffered']
    #allocation8 [shape = 'u8[32768]{0}', space=vmem, size = 0x8000, scoped, tag = 'input window, operand 3, single buffered']
    #allocation9 [shape = 's32[1]{0}', space=sflag, size = 0x4, scoped, tag = 'scoped memory for _gcn_forward.1']
    #allocation10 [shape = 'u8[32768]{0}', space=vmem, size = 0x8000, scoped, tag = 'input window, operand 5, single buffered']
    #allocation11 [shape = 'u8[32768]{0}', space=vmem, size = 0x8000, scoped, tag = 'input window, operand 7, single buffered']
    #allocation12 [shape = 's32[1]{0}', space=sflag, size = 0x4, scoped, tag = 'scoped memory for _gcn_forward.1']
    #allocation13 [shape = 'u8[32768]{0}', space=vmem, size = 0x8000, scoped, tag = 'input window, operand 9, single buffered']
    #allocation14 [shape = 'u8[4096]{0}', space=vmem, size = 0x1000, scoped, tag = 'output window, operand 0, single buffered']
    %16 = vsyncpa [#allocation3], 0
    %17 = vsyncpa [#allocation6], 0
    %18 = vsyncpa [#allocation9], 0
    %19 = vsyncpa [#allocation12], 0
    %20 = vsyncpa [#allocation4], 0
    // Predicated region
    $region2: #{_gcn_forward.1} parent=1 // pred_check
      _
    $region3: #{_gcn_forward.1} parent=1 // pred_check_branch
      %22 = sbr.rel (0) target = $region5
    $region4: #{_gcn_forward.1} parent=1 // pred_region
      %24 = vsyncadd [#allocation3], 0
      %s25 = sshll.u32 %s0, 4
      %s26 = int_to_ptr.hbm [resolvable:$true] %s25
      %s27 = sshll.u32 [#allocation2], 4
      %s28 = int_to_ptr.vmem [resolvable:$true] %s27
      %33 = dma.hbm_to_vmem [thread:$0]  %s26, 256, %s28, [#allocation3], 64, 64, 4
    $region5: #{_gcn_forward.1} parent=1 // pred_fallthru
      _
    // Predicated region
    $region6: #{_gcn_forward.1} parent=1 // pred_check
      _
    $region7: #{_gcn_forward.1} parent=1 // pred_check_branch
      %35 = sbr.rel (0) target = $region9
    $region8: #{_gcn_forward.1} parent=1 // pred_region
      %37 = vsyncadd [#allocation6], 0
      %s38 = sshll.u32 %s1, 4
      %s39 = int_to_ptr.hbm [resolvable:$true] %s38
      %s40 = sshll.u32 [#allocation5], 4
      %s41 = int_to_ptr.vmem [resolvable:$true] %s40
      %46 = dma.hbm_to_vmem [thread:$0]  %s39, 256, %s41, [#allocation6], 64, 64, 4
    $region9: #{_gcn_forward.1} parent=1 // pred_fallthru
      _
    // Predicated region
    $region10: #{_gcn_forward.1} parent=1 // pred_check
      _
    $region11: #{_gcn_forward.1} parent=1 // pred_check_branch
      %48 = sbr.rel (0) target = $region13
    $region12: #{_gcn_forward.1} parent=1 // pred_region
      %50 = vsyncadd [#allocation6], 0
      %s52 = sshll.u32 %s2, 4
      %s53 = int_to_ptr.hbm [resolvable:$true] %s52
      %s54 = sshll.u32 [#allocation7], 4
      %s55 = int_to_ptr.vmem [resolvable:$true] %s54
      %57 = dma.hbm_to_vmem [thread:$0]  %s53, 128, %s55, [#allocation6]
    $region13: #{_gcn_forward.1} parent=1 // pred_fallthru
      _
    // Predicated region
    $region14: #{_gcn_forward.1} parent=1 // pred_check
      _
    $region15: #{_gcn_forward.1} parent=1 // pred_check_branch
      %59 = sbr.rel (0) target = $region17
    $region16: #{_gcn_forward.1} parent=1 // pred_region
      %61 = vsyncadd [#allocation9], 0
      %s62 = sshll.u32 %s3, 4
      %s63 = int_to_ptr.hbm [resolvable:$true] %s62
      %s64 = sshll.u32 [#allocation8], 4
      %s65 = int_to_ptr.vmem [resolvable:$true] %s64
      %70 = dma.hbm_to_vmem [thread:$0]  %s63, 1024, %s65, [#allocation9], 64, 64, 4
    $region17: #{_gcn_forward.1} parent=1 // pred_fallthru
      _
    // Predicated region
    $region18: #{_gcn_forward.1} parent=1 // pred_check
      _
    $region19: #{_gcn_forward.1} parent=1 // pred_check_branch
      %72 = sbr.rel (0) target = $region21
    $region20: #{_gcn_forward.1} parent=1 // pred_region
      _
    $region21: #{_gcn_forward.1} parent=1 // pred_fallthru
      _
    // Predicated region
    $region22: #{_gcn_forward.1} parent=1 // pred_check
      _
    $region23: #{_gcn_forward.1} parent=1 // pred_check_branch
      %74 = sbr.rel (0) target = $region25
    $region24: #{_gcn_forward.1} parent=1 // pred_region
      %76 = vsyncadd [#allocation9], 0
      %s77 = sshll.u32 %s5, 4
      %s78 = int_to_ptr.hbm [resolvable:$true] %s77
      %s79 = sshll.u32 [#allocation10], 4
      %s80 = int_to_ptr.vmem [resolvable:$true] %s79
      %85 = dma.hbm_to_vmem [thread:$0]  %s78, 1024, %s80, [#allocation9], 64, 64, 4
    $region25: #{_gcn_forward.1} parent=1 // pred_fallthru
      _
    // Predicated region
    $region26: #{_gcn_forward.1} parent=1 // pred_check
      _
    $region27: #{_gcn_forward.1} parent=1 // pred_check_branch
      %87 = sbr.rel (0) target = $region29
    $region28: #{_gcn_forward.1} parent=1 // pred_region
      _
    $region29: #{_gcn_forward.1} parent=1 // pred_fallthru
      _
    // Predicated region
    $region30: #{_gcn_forward.1} parent=1 // pred_check
      _
    $region31: #{_gcn_forward.1} parent=1 // pred_check_branch
      %89 = sbr.rel (0) target = $region33
    $region32: #{_gcn_forward.1} parent=1 // pred_region
      %91 = vsyncadd [#allocation12], 0
      %s92 = sshll.u32 %s7, 4
      %s93 = int_to_ptr.hbm [resolvable:$true] %s92
      %s94 = sshll.u32 [#allocation11], 4
      %s95 = int_to_ptr.vmem [resolvable:$true] %s94
      %100 = dma.hbm_to_vmem [thread:$0]  %s93, 1024, %s95, [#allocation12], 64, 64, 4
    $region33: #{_gcn_forward.1} parent=1 // pred_fallthru
      _
    // Predicated region
    $region34: #{_gcn_forward.1} parent=1 // pred_check
      _
    $region35: #{_gcn_forward.1} parent=1 // pred_check_branch
      %102 = sbr.rel (0) target = $region37
    $region36: #{_gcn_forward.1} parent=1 // pred_region
      _
    $region37: #{_gcn_forward.1} parent=1 // pred_fallthru
      _
    // Predicated region
    $region38: #{_gcn_forward.1} parent=1 // pred_check
      _
    $region39: #{_gcn_forward.1} parent=1 // pred_check_branch
      %104 = sbr.rel (0) target = $region41
    $region40: #{_gcn_forward.1} parent=1 // pred_region
      %106 = vsyncadd [#allocation12], 0
      %s107 = sshll.u32 %s9, 4
      %s108 = int_to_ptr.hbm [resolvable:$true] %s107
      %s109 = sshll.u32 [#allocation13], 4
      %s110 = int_to_ptr.vmem [resolvable:$true] %s109
      %115 = dma.hbm_to_vmem [thread:$0]  %s108, 1024, %s110, [#allocation12], 64, 64, 4
    $region41: #{_gcn_forward.1} parent=1 // pred_fallthru
      _
    // Predicated region
    $region42: #{_gcn_forward.1} parent=1 // pred_check
      _
    $region43: #{_gcn_forward.1} parent=1 // pred_check_branch
      %117 = sbr.rel (0) target = $region45
    $region44: #{_gcn_forward.1} parent=1 // pred_region
      _
    $region45: #{_gcn_forward.1} parent=1 // pred_fallthru
      _
    // Predicated region
    $region46: #{_gcn_forward.1} parent=1 // pred_check
      _
    $region47: #{_gcn_forward.1} parent=1 // pred_check_branch
      %119 = sbr.rel (0) target = $region49
    $region48: #{_gcn_forward.1} parent=1 // pred_region
      %121 = dma.done [#allocation3], 256
    $region49: #{_gcn_forward.1} parent=1 // pred_fallthru
      _
    // Predicated region
    $region50: #{_gcn_forward.1} parent=1 // pred_check
      _
    $region51: #{_gcn_forward.1} parent=1 // pred_check_branch
      %123 = sbr.rel (0) target = $region53
    $region52: #{_gcn_forward.1} parent=1 // pred_region
      %125 = dma.done [#allocation6], 256
    $region53: #{_gcn_forward.1} parent=1 // pred_fallthru
      _
    // Predicated region
    $region54: #{_gcn_forward.1} parent=1 // pred_check
      _
    $region55: #{_gcn_forward.1} parent=1 // pred_check_branch
      %127 = sbr.rel (0) target = $region57
    $region56: #{_gcn_forward.1} parent=1 // pred_region
      %129 = dma.done [#allocation6], 128
    $region57: #{_gcn_forward.1} parent=1 // pred_fallthru
      _
    // Predicated region
    $region58: #{_gcn_forward.1} parent=1 // pred_check
      _
    $region59: #{_gcn_forward.1} parent=1 // pred_check_branch
      %131 = sbr.rel (0) target = $region61
    $region60: #{_gcn_forward.1} parent=1 // pred_region
      %133 = dma.done [#allocation9], 1024
    $region61: #{_gcn_forward.1} parent=1 // pred_fallthru
      _
    // Predicated region
    $region62: #{_gcn_forward.1} parent=1 // pred_check
      _
    $region63: #{_gcn_forward.1} parent=1 // pred_check_branch
      %135 = sbr.rel (0) target = $region65
    $region64: #{_gcn_forward.1} parent=1 // pred_region
      %137 = dma.done [#allocation9], 1024
    $region65: #{_gcn_forward.1} parent=1 // pred_fallthru
      _
    // Predicated region
    $region66: #{_gcn_forward.1} parent=1 // pred_check
      _
    $region67: #{_gcn_forward.1} parent=1 // pred_check_branch
      %139 = sbr.rel (0) target = $region69
    $region68: #{_gcn_forward.1} parent=1 // pred_region
      %141 = dma.done [#allocation12], 1024
    $region69: #{_gcn_forward.1} parent=1 // pred_fallthru
      _
    // Predicated region
    $region70: #{_gcn_forward.1} parent=1 // pred_check
      _
    $region71: #{_gcn_forward.1} parent=1 // pred_check_branch
      %143 = sbr.rel (0) target = $region73
    $region72: #{_gcn_forward.1} parent=1 // pred_region
      %145 = dma.done [#allocation12], 1024
    $region73: #{_gcn_forward.1} parent=1 // pred_fallthru
      _
    %v147 = vld [vmem:[#allocation2] sm:$0xf]
    %v148 = vld [vmem:[#allocation2 + $0x4] sm:$0xf]
    %v149 = vld [vmem:[#allocation2 + $0x8] sm:$0xf]
    %v150 = vld [vmem:[#allocation2 + $0xc] sm:$0xf]
    %v151 = vld [vmem:[#allocation5] sm:$0xf]
    %v152 = vld [vmem:[#allocation5 + $0x4] sm:$0xf]
    %v153 = vld [vmem:[#allocation5 + $0x8] sm:$0xf]
    %v154 = vld [vmem:[#allocation5 + $0xc] sm:$0xf]
    %v155 = vld [vmem:[#allocation8] sm:$0xf]
    %v156 = vld [vmem:[#allocation8 + $0x4] sm:$0xf]
    %v157 = vld [vmem:[#allocation8 + $0x8] sm:$0xf]
    %v158 = vld [vmem:[#allocation8 + $0xc] sm:$0xf]
    %v159 = vld [vmem:[#allocation8 + $0x10] sm:$0xf]
    %v160 = vld [vmem:[#allocation8 + $0x14] sm:$0xf]
    %v161 = vld [vmem:[#allocation8 + $0x18] sm:$0xf]
    %v162 = vld [vmem:[#allocation8 + $0x1c] sm:$0xf]
    %v163 = vld [vmem:[#allocation8 + $0x20] sm:$0xf]
    %v164 = vld [vmem:[#allocation8 + $0x24] sm:$0xf]
    %v165 = vld [vmem:[#allocation8 + $0x28] sm:$0xf]
    %v166 = vld [vmem:[#allocation8 + $0x2c] sm:$0xf]
    %v167 = vld [vmem:[#allocation8 + $0x30] sm:$0xf]
    %v168 = vld [vmem:[#allocation8 + $0x34] sm:$0xf]
    %v169 = vld [vmem:[#allocation8 + $0x38] sm:$0xf]
    %v170 = vld [vmem:[#allocation8 + $0x3c] sm:$0xf]
    %v175 = vunpack.c.l.b16 %v151
    %v176 = vunpack.c.l.b16 %v152
    %v177 = vunpack.c.l.b16 %v153
    %v178 = vunpack.c.l.b16 %v154
    %v179 = vpack.c.b16 %v176, %v175
    %v180 = vpack.c.b16 %v178, %v177
    %v199 = vunpack.c.l.b16 %v155
    %v200 = vunpack.c.l.b16 %v156
    %v201 = vunpack.c.l.b16 %v157
    %v202 = vunpack.c.l.b16 %v158
    %v203 = vunpack.c.l.b16 %v159
    %v204 = vunpack.c.l.b16 %v160
    %v205 = vunpack.c.l.b16 %v161
    %v206 = vunpack.c.l.b16 %v162
    %v207 = vunpack.c.l.b16 %v163
    %v208 = vunpack.c.l.b16 %v164
    %v209 = vunpack.c.l.b16 %v165
    %v210 = vunpack.c.l.b16 %v166
    %v211 = vunpack.c.l.b16 %v167
    %v212 = vunpack.c.l.b16 %v168
    %v213 = vunpack.c.l.b16 %v169
    %v214 = vunpack.c.l.b16 %v170
    %v215 = vpack.c.b16 %v200, %v199
    %v216 = vpack.c.b16 %v202, %v201
    %v217 = vpack.c.b16 %v204, %v203
    %v218 = vpack.c.b16 %v206, %v205
    %v219 = vpack.c.b16 %v208, %v207
    %v220 = vpack.c.b16 %v210, %v209
    %v221 = vpack.c.b16 %v212, %v211
    %v222 = vpack.c.b16 %v214, %v213
    %231 = vmatpush.bf16.msra.mxu0 %v222
    %232 = vmatpush.bf16.msra.mxu0 %v221
    %233 = vmatpush.bf16.msra.mxu0 %v220
    %234 = vmatpush.bf16.msra.mxu0 %v219
    %235 = vmatpush.bf16.msra.mxu0 %v218
    %236 = vmatpush.bf16.msra.mxu0 %v217
    %237 = vmatpush.bf16.msra.mxu0 %v216
    %238 = vmatpush.bf16.msra.mxu0 %v215
    %239 = vmatmul.bf16.gmra.mxu0 %v179
    %v240 = vpop.f32.mrf.mxu0
    %v241 = vadd.f32 0.0, %v240
    %v242 = vpop.f32.mrf.mxu0
    %v243 = vadd.f32 0.0, %v242
    %244 = vmatmul.bf16.gmra.mxu0 %v180
    %v245 = vpop.f32.mrf.mxu0
    %v246 = vadd.f32 0.0, %v245
    %v247 = vpop.f32.mrf.mxu0
    %v248 = vadd.f32 0.0, %v247
    %249 = vdwg.mxu0
    %v250 = vpack.c.bf16 %v243, %v241
    %v251 = vpack.c.bf16 %v248, %v246
    %v252 = vld [vmem:[%s4] sm:$0x1]
    %v254 = vperm.slane %v252, 0
    %v260 = vunpack.c.l.b16 %v147
    %v261 = vunpack.c.l.b16 %v148
    %v262 = vunpack.c.l.b16 %v149
    %v263 = vunpack.c.l.b16 %v150
    %v264 = vpack.c.b16 %v261, %v260
    %v265 = vpack.c.b16 %v263, %v262
    %vm266 = vcmask 261120
    %v268 = vsel %vm266, %v264, 0
    %v271 = vsel %vm266, %v265, 0
    %273 = vmatpush.bf16.msra.mxu0 0
    %274 = vmatpush.bf16.msra.mxu0 0
    %275 = vmatpush.bf16.msra.mxu0 0
    %276 = vmatpush.bf16.msra.mxu0 0
    %277 = vmatpush.bf16.msra.mxu0 0
    %278 = vmatpush.bf16.msra.mxu0 0
    %279 = vmatpush.bf16.msra.mxu0 %v251
    %280 = vmatpush.bf16.msra.mxu0 %v250
    %281 = vmatmul.bf16.gmra.mxu0 %v268
    %v282 = vpop.f32.mrf.mxu0
    %v283 = vadd.f32 %v254, %v282
    %v284 = vpop.f32.mrf.mxu0
    %v285 = vadd.f32 %v254, %v284
    %286 = vmatmul.bf16.gmra.mxu0 %v271
    %v287 = vpop.f32.mrf.mxu0
    %v288 = vadd.f32 %v254, %v287
    %v289 = vpop.f32.mrf.mxu0
    %v290 = vadd.f32 %v254, %v289
    %291 = vdwg.mxu0
    %v292 = vmax.f32 %v283, 0.0
    %v293 = vmax.f32 %v285, 0.0
    %v294 = vmax.f32 %v288, 0.0
    %v295 = vmax.f32 %v290, 0.0
    %v296 = vpack.c.bf16 %v293, %v292
    %v297 = vpack.c.bf16 %v295, %v294
    %v298 = vld [vmem:[#allocation10] sm:$0xf]
    %v299 = vld [vmem:[#allocation10 + $0x4] sm:$0xf]
    %v300 = vld [vmem:[#allocation10 + $0x8] sm:$0xf]
    %v301 = vld [vmem:[#allocation10 + $0xc] sm:$0xf]
    %v302 = vld [vmem:[#allocation10 + $0x10] sm:$0xf]
    %v303 = vld [vmem:[#allocation10 + $0x14] sm:$0xf]
    %v304 = vld [vmem:[#allocation10 + $0x18] sm:$0xf]
    %v305 = vld [vmem:[#allocation10 + $0x1c] sm:$0xf]
    %v306 = vld [vmem:[#allocation10 + $0x20] sm:$0xf]
    %v307 = vld [vmem:[#allocation10 + $0x24] sm:$0xf]
    %v308 = vld [vmem:[#allocation10 + $0x28] sm:$0xf]
    %v309 = vld [vmem:[#allocation10 + $0x2c] sm:$0xf]
    %v310 = vld [vmem:[#allocation10 + $0x30] sm:$0xf]
    %v311 = vld [vmem:[#allocation10 + $0x34] sm:$0xf]
    %v312 = vld [vmem:[#allocation10 + $0x38] sm:$0xf]
    %v313 = vld [vmem:[#allocation10 + $0x3c] sm:$0xf]
    %v330 = vunpack.c.l.b16 %v298
    %v331 = vunpack.c.l.b16 %v299
    %v332 = vunpack.c.l.b16 %v300
    %v333 = vunpack.c.l.b16 %v301
    %v334 = vunpack.c.l.b16 %v302
    %v335 = vunpack.c.l.b16 %v303
    %v336 = vunpack.c.l.b16 %v304
    %v337 = vunpack.c.l.b16 %v305
    %v338 = vunpack.c.l.b16 %v306
    %v339 = vunpack.c.l.b16 %v307
    %v340 = vunpack.c.l.b16 %v308
    %v341 = vunpack.c.l.b16 %v309
    %v342 = vunpack.c.l.b16 %v310
    %v343 = vunpack.c.l.b16 %v311
    %v344 = vunpack.c.l.b16 %v312
    %v345 = vunpack.c.l.b16 %v313
    %v346 = vpack.c.b16 %v331, %v330
    %v347 = vpack.c.b16 %v333, %v332
    %v348 = vpack.c.b16 %v335, %v334
    %v349 = vpack.c.b16 %v337, %v336
    %v350 = vpack.c.b16 %v339, %v338
    %v351 = vpack.c.b16 %v341, %v340
    %v352 = vpack.c.b16 %v343, %v342
    %v353 = vpack.c.b16 %v345, %v344
    %362 = vmatpush.bf16.msra.mxu0 %v353
    %363 = vmatpush.bf16.msra.mxu0 %v352
    %364 = vmatpush.bf16.msra.mxu0 %v351
    %365 = vmatpush.bf16.msra.mxu0 %v350
    %366 = vmatpush.bf16.msra.mxu0 %v349
    %367 = vmatpush.bf16.msra.mxu0 %v348
    %368 = vmatpush.bf16.msra.mxu0 %v347
    %369 = vmatpush.bf16.msra.mxu0 %v346
    %370 = vmatmul.bf16.gmra.mxu0 %v296
    %v371 = vpop.f32.mrf.mxu0
    %v372 = vadd.f32 0.0, %v371
    %v373 = vpop.f32.mrf.mxu0
    %v374 = vadd.f32 0.0, %v373
    %375 = vmatmul.bf16.gmra.mxu0 %v297
    %v376 = vpop.f32.mrf.mxu0
    %v377 = vadd.f32 0.0, %v376
    %v378 = vpop.f32.mrf.mxu0
    %v379 = vadd.f32 0.0, %v378
    %380 = vdwg.mxu0
    %v381 = vpack.c.bf16 %v374, %v372
    %v382 = vpack.c.bf16 %v379, %v377
    %v383 = vld [vmem:[%s6] sm:$0x1]
    %v385 = vperm.slane %v383, 0
    %387 = vmatpush.bf16.msra.mxu0 0
    %388 = vmatpush.bf16.msra.mxu0 0
    %389 = vmatpush.bf16.msra.mxu0 0
    %390 = vmatpush.bf16.msra.mxu0 0
    %391 = vmatpush.bf16.msra.mxu0 0
    %392 = vmatpush.bf16.msra.mxu0 0
    %393 = vmatpush.bf16.msra.mxu0 %v382
    %394 = vmatpush.bf16.msra.mxu0 %v381
    %395 = vmatmul.bf16.gmra.mxu0 %v268
    %v396 = vpop.f32.mrf.mxu0
    %v397 = vadd.f32 %v385, %v396
    %v398 = vpop.f32.mrf.mxu0
    %v399 = vadd.f32 %v385, %v398
    %400 = vmatmul.bf16.gmra.mxu0 %v271
    %v401 = vpop.f32.mrf.mxu0
    %v402 = vadd.f32 %v385, %v401
    %v403 = vpop.f32.mrf.mxu0
    %v404 = vadd.f32 %v385, %v403
    %405 = vdwg.mxu0
    %v406 = vmax.f32 %v397, 0.0
    %v407 = vmax.f32 %v399, 0.0
    %v408 = vmax.f32 %v402, 0.0
    %v409 = vmax.f32 %v404, 0.0
    %v410 = vpack.c.bf16 %v407, %v406
    %v411 = vpack.c.bf16 %v409, %v408
    %v412 = vld [vmem:[#allocation11] sm:$0xf]
    %v413 = vld [vmem:[#allocation11 + $0x4] sm:$0xf]
    %v414 = vld [vmem:[#allocation11 + $0x8] sm:$0xf]
    %v415 = vld [vmem:[#allocation11 + $0xc] sm:$0xf]
    %v416 = vld [vmem:[#allocation11 + $0x10] sm:$0xf]
    %v417 = vld [vmem:[#allocation11 + $0x14] sm:$0xf]
    %v418 = vld [vmem:[#allocation11 + $0x18] sm:$0xf]
    %v419 = vld [vmem:[#allocation11 + $0x1c] sm:$0xf]
    %v420 = vld [vmem:[#allocation11 + $0x20] sm:$0xf]
    %v421 = vld [vmem:[#allocation11 + $0x24] sm:$0xf]
    %v422 = vld [vmem:[#allocation11 + $0x28] sm:$0xf]
    %v423 = vld [vmem:[#allocation11 + $0x2c] sm:$0xf]
    %v424 = vld [vmem:[#allocation11 + $0x30] sm:$0xf]
    %v425 = vld [vmem:[#allocation11 + $0x34] sm:$0xf]
    %v426 = vld [vmem:[#allocation11 + $0x38] sm:$0xf]
    %v427 = vld [vmem:[#allocation11 + $0x3c] sm:$0xf]
    %v444 = vunpack.c.l.b16 %v412
    %v445 = vunpack.c.l.b16 %v413
    %v446 = vunpack.c.l.b16 %v414
    %v447 = vunpack.c.l.b16 %v415
    %v448 = vunpack.c.l.b16 %v416
    %v449 = vunpack.c.l.b16 %v417
    %v450 = vunpack.c.l.b16 %v418
    %v451 = vunpack.c.l.b16 %v419
    %v452 = vunpack.c.l.b16 %v420
    %v453 = vunpack.c.l.b16 %v421
    %v454 = vunpack.c.l.b16 %v422
    %v455 = vunpack.c.l.b16 %v423
    %v456 = vunpack.c.l.b16 %v424
    %v457 = vunpack.c.l.b16 %v425
    %v458 = vunpack.c.l.b16 %v426
    %v459 = vunpack.c.l.b16 %v427
    %v460 = vpack.c.b16 %v445, %v444
    %v461 = vpack.c.b16 %v447, %v446
    %v462 = vpack.c.b16 %v449, %v448
    %v463 = vpack.c.b16 %v451, %v450
    %v464 = vpack.c.b16 %v453, %v452
    %v465 = vpack.c.b16 %v455, %v454
    %v466 = vpack.c.b16 %v457, %v456
    %v467 = vpack.c.b16 %v459, %v458
    %476 = vmatpush.bf16.msra.mxu0 %v467
    %477 = vmatpush.bf16.msra.mxu0 %v466
    %478 = vmatpush.bf16.msra.mxu0 %v465
    %479 = vmatpush.bf16.msra.mxu0 %v464
    %480 = vmatpush.bf16.msra.mxu0 %v463
    %481 = vmatpush.bf16.msra.mxu0 %v462
    %482 = vmatpush.bf16.msra.mxu0 %v461
    %483 = vmatpush.bf16.msra.mxu0 %v460
    %484 = vmatmul.bf16.gmra.mxu0 %v410
    %v485 = vpop.f32.mrf.mxu0
    %v486 = vadd.f32 0.0, %v485
    %v487 = vpop.f32.mrf.mxu0
    %v488 = vadd.f32 0.0, %v487
    %489 = vmatmul.bf16.gmra.mxu0 %v411
    %v490 = vpop.f32.mrf.mxu0
    %v491 = vadd.f32 0.0, %v490
    %v492 = vpop.f32.mrf.mxu0
    %v493 = vadd.f32 0.0, %v492
    %494 = vdwg.mxu0
    %v495 = vpack.c.bf16 %v488, %v486
    %v496 = vpack.c.bf16 %v493, %v491
    %v497 = vld [vmem:[%s8] sm:$0x1]
    %v499 = vperm.slane %v497, 0
    %501 = vmatpush.bf16.msra.mxu0 0
    %502 = vmatpush.bf16.msra.mxu0 0
    %503 = vmatpush.bf16.msra.mxu0 0
    %504 = vmatpush.bf16.msra.mxu0 0
    %505 = vmatpush.bf16.msra.mxu0 0
    %506 = vmatpush.bf16.msra.mxu0 0
    %507 = vmatpush.bf16.msra.mxu0 %v496
    %508 = vmatpush.bf16.msra.mxu0 %v495
    %509 = vmatmul.bf16.gmra.mxu0 %v268
    %v510 = vpop.f32.mrf.mxu0
    %v511 = vadd.f32 %v499, %v510
    %v512 = vpop.f32.mrf.mxu0
    %v513 = vadd.f32 %v499, %v512
    %514 = vmatmul.bf16.gmra.mxu0 %v271
    %v515 = vpop.f32.mrf.mxu0
    %v516 = vadd.f32 %v499, %v515
    %v517 = vpop.f32.mrf.mxu0
    %v518 = vadd.f32 %v499, %v517
    %519 = vdwg.mxu0
    %v520 = vld [vmem:[#allocation7] sm:$0xff]
    %v522 = vsel %vm266, %v520, 0
    %524 = vmatpush.msra.mxu0 0.0
    %525 = vmatpush.msra.mxu0 0.0
    %526 = vmatpush.msra.mxu0 0.0
    %527 = vmatpush.msra.mxu0 0.0
    %528 = vmatpush.msra.mxu0 0.0
    %529 = vmatpush.msra.mxu0 0.0
    %530 = vmatpush.msra.mxu0 0.0
    %531 = vmatpush.msra.mxu0 0.0
    %532 = vmatpush.msra.mxu0 0.0
    %533 = vmatpush.msra.mxu0 0.0
    %534 = vmatpush.msra.mxu0 0.0
    %535 = vmatpush.msra.mxu0 0.0
    %536 = vmatpush.msra.mxu0 %v518
    %537 = vmatpush.msra.mxu0 %v516
    %538 = vmatpush.msra.mxu0 %v513
    %539 = vmatpush.msra.mxu0 %v511
    %540 = vmatmul.f32.gmra.mxu0 %v522
    %v541 = vpop.f32.mrf.mxu0
    %v542 = vadd.f32 0.0, %v541
    %543 = vdwg.mxu0
    %v544 = vpack.c.bf16 %v542, %v542
    %v545 = vld [vmem:[#allocation13] sm:$0xf]
    %v546 = vld [vmem:[#allocation13 + $0x4] sm:$0xf]
    %v547 = vld [vmem:[#allocation13 + $0x8] sm:$0xf]
    %v548 = vld [vmem:[#allocation13 + $0xc] sm:$0xf]
    %v549 = vld [vmem:[#allocation13 + $0x10] sm:$0xf]
    %v550 = vld [vmem:[#allocation13 + $0x14] sm:$0xf]
    %v551 = vld [vmem:[#allocation13 + $0x18] sm:$0xf]
    %v552 = vld [vmem:[#allocation13 + $0x1c] sm:$0xf]
    %v553 = vld [vmem:[#allocation13 + $0x20] sm:$0xf]
    %v554 = vld [vmem:[#allocation13 + $0x24] sm:$0xf]
    %v555 = vld [vmem:[#allocation13 + $0x28] sm:$0xf]
    %v556 = vld [vmem:[#allocation13 + $0x2c] sm:$0xf]
    %v557 = vld [vmem:[#allocation13 + $0x30] sm:$0xf]
    %v558 = vld [vmem:[#allocation13 + $0x34] sm:$0xf]
    %v559 = vld [vmem:[#allocation13 + $0x38] sm:$0xf]
    %v560 = vld [vmem:[#allocation13 + $0x3c] sm:$0xf]
    %v561 = vld [vmem:[%s10] sm:$0x1]
    %v563 = vperm.slane %v561, 0
    %v581 = vunpack.c.l.b16 %v545
    %v582 = vunpack.c.l.b16 %v546
    %v583 = vunpack.c.l.b16 %v547
    %v584 = vunpack.c.l.b16 %v548
    %v585 = vunpack.c.l.b16 %v549
    %v586 = vunpack.c.l.b16 %v550
    %v587 = vunpack.c.l.b16 %v551
    %v588 = vunpack.c.l.b16 %v552
    %v589 = vunpack.c.l.b16 %v553
    %v590 = vunpack.c.l.b16 %v554
    %v591 = vunpack.c.l.b16 %v555
    %v592 = vunpack.c.l.b16 %v556
    %v593 = vunpack.c.l.b16 %v557
    %v594 = vunpack.c.l.b16 %v558
    %v595 = vunpack.c.l.b16 %v559
    %v596 = vunpack.c.l.b16 %v560
    %v597 = vpack.c.b16 %v582, %v581
    %v598 = vpack.c.b16 %v584, %v583
    %v599 = vpack.c.b16 %v586, %v585
    %v600 = vpack.c.b16 %v588, %v587
    %v601 = vpack.c.b16 %v590, %v589
    %v602 = vpack.c.b16 %v592, %v591
    %v603 = vpack.c.b16 %v594, %v593
    %v604 = vpack.c.b16 %v596, %v595
    %613 = vmatpush.bf16.msra.mxu0 %v604
    %614 = vmatpush.bf16.msra.mxu0 %v603
    %615 = vmatpush.bf16.msra.mxu0 %v602
    %616 = vmatpush.bf16.msra.mxu0 %v601
    %617 = vmatpush.bf16.msra.mxu0 %v600
    %618 = vmatpush.bf16.msra.mxu0 %v599
    %619 = vmatpush.bf16.msra.mxu0 %v598
    %620 = vmatpush.bf16.msra.mxu0 %v597
    %621 = vmatmul.bf16.gmra.mxu0 %v544
    %v622 = vpop.f32.mrf.mxu0
    %v623 = vadd.f32 %v563, %v622
    %v624 = vpop.f32.mrf.mxu0
    %625 = vdwg.mxu0
    %626 = vst [vmem:[#allocation14] sm:$0xff] %v623
    // Predicated region
    $region74: #{_gcn_forward.1} parent=1 // pred_check
      _
    $region75: #{_gcn_forward.1} parent=1 // pred_check_branch
      %628 = sbr.rel (0) target = $region77
    $region76: #{_gcn_forward.1} parent=1 // pred_region
      %630 = vsyncadd [#allocation4], 0
      %s632 = sshll.u32 [#allocation14], 4
      %s633 = int_to_ptr.vmem [resolvable:$true] %s632
      %s634 = sshll.u32 %s11, 4
      %s635 = int_to_ptr.hbm [resolvable:$true] %s634
      %637 = dma.vmem_to_hbm [thread:$0]  %s633, 128, %s635, [#allocation4]
    $region77: #{_gcn_forward.1} parent=1 // pred_fallthru
      _
    // Predicated region
    $region78: #{_gcn_forward.1} parent=1 // pred_check
      _
    $region79: #{_gcn_forward.1} parent=1 // pred_check_branch
      %639 = sbr.rel (0) target = $region81
    $region80: #{_gcn_forward.1} parent=1 // pred_region
      %641 = dma.done [#allocation4], 128
    $region81: #{_gcn_forward.1} parent=1 // pred_fallthru
      _
    %642 = vsyncpa [#allocation3], 1
    %643 = vsyncpa [#allocation6], 1
    %644 = vsyncpa [#allocation9], 1
    %645 = vsyncpa [#allocation12], 1
    %646 = vsyncpa [#allocation4], 1

</llo_original>
